<compile_context>
chip_gen: v5e
topology: v5e:2x2
jax: 0.10.0
libtpu: 0.0.40
codegen_flags: <defaults>
</compile_context>

<pallas_src>
import jax
import jax.numpy as jnp
from jax.experimental import pallas as pl
from jax.experimental.pallas import tpu as pltpu


def temporal_attention_kernel(x_ref, w1_ref, b1_ref, w2_ref, b2_ref,
                              att_out_ref, wts_out_ref):
    Bb, T, H = x_ref.shape
    Hh = w1_ref.shape[1]

    x = x_ref[...]                      # (Bb, T, H), input dtype (f32 or bf16)
    w1 = w1_ref[...]                    # (H, Hh), same dtype as x
    b1 = b1_ref[...]                    # (1, Hh), f32
    w2 = w2_ref[...]                    # (1, Hh), f32
    b2 = b2_ref[...]                    # (1, 1),  f32

    # ---- scoring MLP: fuse the first matmul over all Bb*T rows (one MXU op)
    x2 = x.reshape(Bb * T, H)
    h = jnp.dot(x2, w1, preferred_element_type=jnp.float32) + b1    # (Bb*T, Hh) f32
    h = jnp.maximum(h, 0.0)                                         # ReLU

    # second linear: contract Hh on the lane axis -> lane-dense (Bb, T) scores
    h3 = h.reshape(Bb, T, Hh)
    s = jnp.sum(h3 * w2.reshape(1, 1, Hh), axis=-1) + b2            # (Bb, T) f32

    # ---- softmax over T (last / lane axis), f32 math (v5e has no bf16 VPU/EUP)
    m = jnp.max(s, axis=-1, keepdims=True)                          # (Bb, 1)
    e = jnp.exp(s - m)                                              # (Bb, T)
    denom = jnp.sum(e, axis=-1, keepdims=True)                      # (Bb, 1)
    a = e * pl.reciprocal(denom, approx=True)                       # (Bb, T) f32

    # ---- attention-weighted sum over T as a batched matvec on the MXU
    attended = jnp.einsum('bqt,bth->bqh', a.astype(x.dtype)[:, None, :], x,
                          preferred_element_type=jnp.float32)       # (Bb, 1, H)
    attended = attended.reshape(Bb, H)

    att_out_ref[...] = attended.astype(att_out_ref.dtype)           # (Bb, H)
    wts_out_ref[...] = a.astype(wts_out_ref.dtype)                  # (Bb, T)


def _choose_block_b(B, T, H, dtype_bytes):
    """Pick the batch tile: large enough to amortize ~0.35us/step grid overhead
    (target ~2 MiB per x tile), small enough to double-buffer comfortably under
    v5e/v6e/v7x scoped-VMEM limits, and keeping >=2 grid steps when possible so
    v7x's two TensorCores both get work."""
    if B <= 8:
        return B
    row_bytes = T * H * dtype_bytes
    target_bytes = 2 * 1024 * 1024
    bb = max(8, (target_bytes // row_bytes // 8) * 8)
    if B >= 16:
        bb = min(bb, max(8, (B // 16) * 8))   # leave >= 2 grid steps (v7x megacore)
    return int(min(bb, (B // 8) * 8))


def temporal_attention(lstm_output, w1, b1, w2, b2, *, block_b=None):
    B, T, H = lstm_output.shape
    Hh = w1.shape[1]
    assert w1.shape == (H, Hh) and w2.size == Hh

    dtype = lstm_output.dtype
    dtype_bytes = jnp.dtype(dtype).itemsize
    Bb = block_b if block_b is not None else _choose_block_b(B, T, H, dtype_bytes)
    grid_b = pl.cdiv(B, Bb)

    # Keep x / W1 in the caller's dtype (bf16 stays bf16 in HBM: MXU takes bf16
    # natively with f32 accumulation).  Small params stay f32 for the VPU math.
    w1_c = w1.astype(dtype)
    b1_2d = b1.reshape(1, Hh).astype(jnp.float32)
    w2_2d = w2.reshape(1, Hh).astype(jnp.float32)
    b2_2d = b2.reshape(1, 1).astype(jnp.float32)

    flops = (2 * B * T * H * Hh      # first linear
             + 3 * B * T * Hh        # relu + second linear
             + 2 * B * T * H         # attention-weighted sum
             + 5 * B * T)            # softmax elementwise
    bytes_accessed = ((B * T * H + H * Hh) * dtype_bytes
                      + (2 * Hh + 1) * 4
                      + (B * H + B * T) * dtype_bytes)

    attended, weights = pl.pallas_call(
        temporal_attention_kernel,
        out_shape=(
            jax.ShapeDtypeStruct((B, H), dtype),
            jax.ShapeDtypeStruct((B, T), dtype),
        ),
        grid_spec=pltpu.PrefetchScalarGridSpec(
            num_scalar_prefetch=0,
            grid=(grid_b,),
            in_specs=[
                pl.BlockSpec((Bb, T, H), lambda b: (b, 0, 0)),   # lstm_output tile
                pl.BlockSpec((H, Hh), lambda b: (0, 0)),         # W1 (resident)
                pl.BlockSpec((1, Hh), lambda b: (0, 0)),         # b1
                pl.BlockSpec((1, Hh), lambda b: (0, 0)),         # W2 (row vector)
                pl.BlockSpec((1, 1), lambda b: (0, 0)),          # b2
            ],
            out_specs=[
                pl.BlockSpec((Bb, H), lambda b: (b, 0)),         # attended_output
                pl.BlockSpec((Bb, T), lambda b: (b, 0)),         # attention_weights
            ],
        ),
        compiler_params=pltpu.CompilerParams(
            dimension_semantics=("parallel",),
            vmem_limit_bytes=32 * 1024 * 1024,
        ),
        cost_estimate=pl.CostEstimate(
            flops=flops,
            transcendentals=B * T + B,
            bytes_accessed=bytes_accessed,
        ),
    )(lstm_output, w1_c, b1_2d, w2_2d, b2_2d)
    return attended, weights


def reference(lstm_output, w1, b1, w2, b2):
    # pure-JAX reference matching the PyTorch forward
    h = jnp.maximum(lstm_output @ w1 + b1, 0.0)          # (B, T, H//2)
    s = (h @ w2)[..., 0] + b2                            # (B, T)
    a = jax.nn.softmax(s, axis=1)                        # (B, T)
    attended = jnp.sum(a[..., None] * lstm_output, axis=1)
    return attended, a


if __name__ == "__main__":
    B, T, H = 2, 8, 32
    Hh = H // 2

    key = jax.random.PRNGKey(0)
    kx, k1, kb1, k2, kb2 = jax.random.split(key, 5)

    lstm_output = jax.random.normal(kx, (B, T, H), dtype=jnp.float32)
    w1 = (jax.random.uniform(k1, (H, Hh), minval=-1.0, maxval=1.0)
          / jnp.sqrt(H)).astype(jnp.float32)
    b1 = (jax.random.uniform(kb1, (Hh,), minval=-1.0, maxval=1.0)
          / jnp.sqrt(H)).astype(jnp.float32)
    w2 = (jax.random.uniform(k2, (Hh, 1), minval=-1.0, maxval=1.0)
          / jnp.sqrt(Hh)).astype(jnp.float32)
    b2 = (jax.random.uniform(kb2, (1,), minval=-1.0, maxval=1.0)
          / jnp.sqrt(Hh)).astype(jnp.float32)

    ref_att, ref_w = reference(lstm_output, w1, b1, w2, b2)

    # f32 path (tolerance absorbs the approx EUP reciprocal in the softmax)
    attended, weights = temporal_attention(lstm_output, w1, b1, w2, b2)
    jax.block_until_ready((attended, weights))
    assert jnp.allclose(attended, ref_att, atol=2e-3, rtol=2e-3)
    assert jnp.allclose(weights, ref_w, atol=2e-3, rtol=2e-3)

    # bf16 memory-bound path: x/W1 stay bf16 in HBM, matmuls accumulate in f32,
    # softmax runs in f32 inside the kernel.
    att_bf16, w_bf16 = temporal_attention(
        lstm_output.astype(jnp.bfloat16), w1, b1, w2, b2)
    jax.block_until_ready((att_bf16, w_bf16))
    assert jnp.allclose(att_bf16.astype(jnp.float32), ref_att, atol=1e-1, rtol=1e-1)
    assert jnp.allclose(w_bf16.astype(jnp.float32), ref_w, atol=1e-1, rtol=1e-1)

    print("KERNEL_OK")
</pallas_src>

<mosaic_0001>
module attributes {stable_mosaic.version = 11 : i64} {
  func.func @temporal_attention_kernel(%arg0: i32, %arg1: memref<2x8x32xf32, #tpu.memory_space<vmem>>, %arg2: memref<32x16xf32, #tpu.memory_space<vmem>>, %arg3: memref<1x16xf32, #tpu.memory_space<vmem>>, %arg4: memref<1x16xf32, #tpu.memory_space<vmem>>, %arg5: memref<1x1xf32, #tpu.memory_space<vmem>>, %arg6: memref<2x32xf32, #tpu.memory_space<vmem>>, %arg7: memref<2x8xf32, #tpu.memory_space<vmem>>) attributes {dimension_semantics = [#tpu.dimension_semantics<parallel>], iteration_bounds = array<i64: 1>, scalar_prefetch = 0 : i64, scratch_operands = 0 : i64, tpu.core_type = #tpu.core_type<tc>, window_params = [{transform_indices = @transform_0, window_bounds = array<i64: 2, 8, 32>}, {pipeline_mode = #tpu.pipeline_mode<synchronous>, transform_indices = @transform_1, window_bounds = array<i64: 32, 16>}, {pipeline_mode = #tpu.pipeline_mode<synchronous>, transform_indices = @transform_2, window_bounds = array<i64: 1, 16>}, {pipeline_mode = #tpu.pipeline_mode<synchronous>, transform_indices = @transform_3, window_bounds = array<i64: 1, 16>}, {pipeline_mode = #tpu.pipeline_mode<synchronous>, transform_indices = @transform_4, window_bounds = array<i64: 1, 1>}, {transform_indices = @transform_5, window_bounds = array<i64: 2, 32>}, {transform_indices = @transform_6, window_bounds = array<i64: 2, 8>}]} {
    %c0 = arith.constant 0 : index
    %c0_0 = arith.constant 0 : index
    %c0_1 = arith.constant 0 : index
    %0 = vector.load %arg1[%c0, %c0_0, %c0_1] : memref<2x8x32xf32, #tpu.memory_space<vmem>>, vector<2x8x32xf32>
    %c0_2 = arith.constant 0 : index
    %c0_3 = arith.constant 0 : index
    %1 = vector.load %arg2[%c0_2, %c0_3] : memref<32x16xf32, #tpu.memory_space<vmem>>, vector<32x16xf32>
    %c0_4 = arith.constant 0 : index
    %c0_5 = arith.constant 0 : index
    %2 = vector.load %arg3[%c0_4, %c0_5] : memref<1x16xf32, #tpu.memory_space<vmem>>, vector<1x16xf32>
    %c0_6 = arith.constant 0 : index
    %c0_7 = arith.constant 0 : index
    %3 = vector.load %arg4[%c0_6, %c0_7] : memref<1x16xf32, #tpu.memory_space<vmem>>, vector<1x16xf32>
    %c0_8 = arith.constant 0 : index
    %c0_9 = arith.constant 0 : index
    %4 = vector.load %arg5[%c0_8, %c0_9] : memref<1x1xf32, #tpu.memory_space<vmem>>, vector<1x1xf32>
    %5 = vector.shape_cast %0 : vector<2x8x32xf32> to vector<16x32xf32>
    %cst = arith.constant dense<0.000000e+00> : vector<16x16xf32>
    %6 = tpu.matmul %5, %1, %cst {dimension_numbers = #tpu.dot_dimension_numbers<[1], [0], [0], [1], [0, 0, 1, 1], [], []>} : vector<16x32xf32>, vector<32x16xf32>, vector<16x16xf32> -> vector<16x16xf32>
    %7 = vector.broadcast %2 : vector<1x16xf32> to vector<16x16xf32>
    %8 = arith.addf %6, %7 : vector<16x16xf32>
    %cst_10 = arith.constant 0.000000e+00 : f32
    %9 = vector.broadcast %cst_10 : f32 to vector<16x16xf32>
    %10 = arith.maximumf %8, %9 : vector<16x16xf32>
    %11 = vector.shape_cast %10 : vector<16x16xf32> to vector<2x8x16xf32>
    %12 = vector.shape_cast %3 : vector<1x16xf32> to vector<1x1x16xf32>
    %13 = vector.broadcast %12 : vector<1x1x16xf32> to vector<2x8x16xf32>
    %14 = arith.mulf %11, %13 : vector<2x8x16xf32>
    %cst_11 = arith.constant dense<0.000000e+00> : vector<2x8xf32>
    %15 = vector.multi_reduction <add>, %14, %cst_11 [2] : vector<2x8x16xf32> to vector<2x8xf32>
    %16 = vector.broadcast %4 : vector<1x1xf32> to vector<2x8xf32>
    %17 = arith.addf %15, %16 : vector<2x8xf32>
    %cst_12 = arith.constant dense<0xFF800000> : vector<2xf32>
    %18 = vector.multi_reduction <maximumf>, %17, %cst_12 [1] : vector<2x8xf32> to vector<2xf32>
    %19 = vector.shape_cast %18 : vector<2xf32> to vector<2x1xf32>
    %20 = vector.broadcast %19 : vector<2x1xf32> to vector<2x8xf32>
    %21 = arith.subf %17, %20 : vector<2x8xf32>
    %22 = math.exp %21 : vector<2x8xf32>
    %cst_13 = arith.constant dense<0.000000e+00> : vector<2xf32>
    %23 = vector.multi_reduction <add>, %22, %cst_13 [1] : vector<2x8xf32> to vector<2xf32>
    %24 = vector.shape_cast %23 : vector<2xf32> to vector<2x1xf32>
    %25 = tpu.reciprocal %24 {approx = true} : vector<2x1xf32> -> vector<2x1xf32>
    %26 = vector.broadcast %25 : vector<2x1xf32> to vector<2x8xf32>
    %27 = arith.mulf %22, %26 : vector<2x8xf32>
    %28 = vector.shape_cast %27 : vector<2x8xf32> to vector<2x1x8xf32>
    "tpu.trace_start"() <{level = 10 : i32, message = "bqt,bth->bqh"}> : () -> ()
    %cst_14 = arith.constant dense<0.000000e+00> : vector<2x1x32xf32>
    %29 = tpu.matmul %28, %0, %cst_14 {dimension_numbers = #tpu.dot_dimension_numbers<[2], [1], [1], [2], [0, 0, 0, 1, 1, 2], [0], [0]>} : vector<2x1x8xf32>, vector<2x8x32xf32>, vector<2x1x32xf32> -> vector<2x1x32xf32>
    "tpu.trace_stop"() : () -> ()
    %30 = vector.shape_cast %29 : vector<2x1x32xf32> to vector<2x32xf32>
    %c0_15 = arith.constant 0 : index
    %c0_16 = arith.constant 0 : index
    %31 = vector.load %arg6[%c0_15, %c0_16] : memref<2x32xf32, #tpu.memory_space<vmem>>, vector<2x32xf32>
    tpu.vector_store %arg6[%c0_15, %c0_16], %30 {strides = array<i32>} : memref<2x32xf32, #tpu.memory_space<vmem>>, vector<2x32xf32>,
    %c0_17 = arith.constant 0 : index
    %c0_18 = arith.constant 0 : index
    %32 = vector.load %arg7[%c0_17, %c0_18] : memref<2x8xf32, #tpu.memory_space<vmem>>, vector<2x8xf32>
    tpu.vector_store %arg7[%c0_17, %c0_18], %27 {strides = array<i32>} : memref<2x8xf32, #tpu.memory_space<vmem>>, vector<2x8xf32>,
    return
  }
  func.func @transform_0(%arg0: i32) -> (i32, i32, i32) {
    %c0_i32 = arith.constant 0 : i32
    %c0_i32_0 = arith.constant 0 : i32
    %c0_i32_1 = arith.constant 0 : i32
    return %arg0, %c0_i32, %c0_i32_0 : i32, i32, i32
  }
  func.func @transform_1(%arg0: i32) -> (i32, i32) {
    %c0_i32 = arith.constant 0 : i32
    %c0_i32_0 = arith.constant 0 : i32
    %c0_i32_1 = arith.constant 0 : i32
    return %c0_i32, %c0_i32_0 : i32, i32
  }
  func.func @transform_2(%arg0: i32) -> (i32, i32) {
    %c0_i32 = arith.constant 0 : i32
    %c0_i32_0 = arith.constant 0 : i32
    %c0_i32_1 = arith.constant 0 : i32
    return %c0_i32, %c0_i32_0 : i32, i32
  }
  func.func @transform_3(%arg0: i32) -> (i32, i32) {
    %c0_i32 = arith.constant 0 : i32
    %c0_i32_0 = arith.constant 0 : i32
    %c0_i32_1 = arith.constant 0 : i32
    return %c0_i32, %c0_i32_0 : i32, i32
  }
  func.func @transform_4(%arg0: i32) -> (i32, i32) {
    %c0_i32 = arith.constant 0 : i32
    %c0_i32_0 = arith.constant 0 : i32
    %c0_i32_1 = arith.constant 0 : i32
    return %c0_i32, %c0_i32_0 : i32, i32
  }
  func.func @transform_5(%arg0: i32) -> (i32, i32) {
    %c0_i32 = arith.constant 0 : i32
    %c0_i32_0 = arith.constant 0 : i32
    return %arg0, %c0_i32 : i32, i32
  }
  func.func @transform_6(%arg0: i32) -> (i32, i32) {
    %c0_i32 = arith.constant 0 : i32
    %c0_i32_0 = arith.constant 0 : i32
    return %arg0, %c0_i32 : i32, i32
  }
}

</mosaic_0001>

<llo_original>
// kernel: tpu_custom_call.1
$region0: #{tpu_custom_call.1}
  #allocation0 [shape = 'u32[]', space=smem, size = 0x4, offset = 0x4, fixed_abs, tag = 'smem constant byte address 0x4 - core index']
  #allocation1 [shape = 'u32[72,128]{1,0:T(1,128)}', space=vmem, size = 0x9000, scoped, tag = 'internal scratch']
  #allocation2 [shape = 'f32[1,1]{1,0:T(1,128)S(1)}', space=vmem, size = 0x200, scoped, tag = 'scoped memory for tpu_custom_call.1']
  %s0 = inlined_call_operand.vmem [shape: f32[2,8,32], index: 0, kind: input, shape index: {}]
  %s1 = inlined_call_operand.vmem [shape: f32[32,16], index: 1, kind: input, shape index: {}]
  %s2 = inlined_call_operand.vmem [shape: f32[1,16], index: 2, kind: input, shape index: {}]
  %s3 = inlined_call_operand.vmem [shape: f32[1,16], index: 3, kind: input, shape index: {}]
  %s4 = inlined_call_operand.<no memory space> [shape: f32[1,1], index: 4, kind: input, shape index: {}]
  %s5 = inlined_call_operand.hbm [shape: f32[2,32], index: 5, kind: output, shape index: {0}]
  %s6 = inlined_call_operand.hbm [shape: f32[2,8], index: 6, kind: output, shape index: {1}]
  %7 = xla_tuple %s5, %s6
  %s8 = sld [smem:[#allocation0]]
  $region38: #{tpu_custom_call.1} parent=0
    _
  %s10 = ssub.s32 1, %s8
  %s11 = scalar_select 0, %s10, %s8
  %v12 = vstv %s4
  %13 = vst [vmem:[#allocation2] sm:$0x1] %v12
  $region1: #{tpu_custom_call.1} parent=0
    #allocation3 [shape = 'u8[1024]{0}', space=vmem, size = 0x400, scoped, tag = 'output window, operand 0, single buffered']
    #allocation4 [shape = 's32[1]{0}', space=sflag, size = 0x4, scoped, tag = 'scoped memory for tpu_custom_call.1']
    #allocation5 [shape = 'u8[1024]{0}', space=vmem, size = 0x400, scoped, tag = 'output window, operand 1, single buffered']
    #allocation6 [shape = 's32[1]{0}', space=sflag, size = 0x4, scoped, tag = 'scoped memory for tpu_custom_call.1']
    %14 = vsyncpa [#allocation4], 0
    %15 = vsyncpa [#allocation6], 0
    // Predicated region
    $region2: #{tpu_custom_call.1} parent=1 // pred_check
      _
    $region3: #{tpu_custom_call.1} parent=1 // pred_check_branch
      %17 = sbr.rel (0) target = $region5
    $region4: #{tpu_custom_call.1} parent=1 // pred_region
      _
    $region5: #{tpu_custom_call.1} parent=1 // pred_fallthru
      _
    // Predicated region
    $region6: #{tpu_custom_call.1} parent=1 // pred_check
      _
    $region7: #{tpu_custom_call.1} parent=1 // pred_check_branch
      %19 = sbr.rel (0) target = $region9
    $region8: #{tpu_custom_call.1} parent=1 // pred_region
      _
    $region9: #{tpu_custom_call.1} parent=1 // pred_fallthru
      _
    // Predicated region
    $region10: #{tpu_custom_call.1} parent=1 // pred_check
      _
    $region11: #{tpu_custom_call.1} parent=1 // pred_check_branch
      %21 = sbr.rel (0) target = $region13
    $region12: #{tpu_custom_call.1} parent=1 // pred_region
      _
    $region13: #{tpu_custom_call.1} parent=1 // pred_fallthru
      _
    // Predicated region
    $region14: #{tpu_custom_call.1} parent=1 // pred_check
      _
    $region15: #{tpu_custom_call.1} parent=1 // pred_check_branch
      %23 = sbr.rel (0) target = $region17
    $region16: #{tpu_custom_call.1} parent=1 // pred_region
      _
    $region17: #{tpu_custom_call.1} parent=1 // pred_fallthru
      _
    // Predicated region
    $region18: #{tpu_custom_call.1} parent=1 // pred_check
      _
    $region19: #{tpu_custom_call.1} parent=1 // pred_check_branch
      %25 = sbr.rel (0) target = $region21
    $region20: #{tpu_custom_call.1} parent=1 // pred_region
      _
    $region21: #{tpu_custom_call.1} parent=1 // pred_fallthru
      _
    %v26 = vld [vmem:[%s0] sm:$0xff]
    %v27 = vld [vmem:[%s0 + $0x8] sm:$0xff]
    %v28 = vld [vmem:[%s1] sm:$0xff]
    %v29 = vld [vmem:[%s1 + $0x8] sm:$0xff]
    %v30 = vld [vmem:[%s1 + $0x10] sm:$0xff]
    %v31 = vld [vmem:[%s1 + $0x18] sm:$0xff]
    %v32 = vld [vmem:[%s2] sm:$0x1]
    %v33 = vld [vmem:[%s3] sm:$0x1]
    %v34 = vld [vmem:[#allocation2] sm:$0x1]
    %v36 = vperm.slane %v32, 0
    %vm38 = vcmask 261120
    %v40 = vsel %vm38, %v26, 0
    %v43 = vsel %vm38, %v27, 0
    %45 = vmatpush.msra.mxu0 0.0
    %46 = vmatpush.msra.mxu0 0.0
    %47 = vmatpush.msra.mxu0 0.0
    %48 = vmatpush.msra.mxu0 0.0
    %49 = vmatpush.msra.mxu0 0.0
    %50 = vmatpush.msra.mxu0 0.0
    %51 = vmatpush.msra.mxu0 0.0
    %52 = vmatpush.msra.mxu0 0.0
    %53 = vmatpush.msra.mxu0 0.0
    %54 = vmatpush.msra.mxu0 0.0
    %55 = vmatpush.msra.mxu0 0.0
    %56 = vmatpush.msra.mxu0 0.0
    %57 = vmatpush.msra.mxu0 %v31
    %58 = vmatpush.msra.mxu0 %v30
    %59 = vmatpush.msra.mxu0 %v29
    %60 = vmatpush.msra.mxu0 %v28
    %61 = vmatmul.f32.gmra.mxu0 %v40
    %v62 = vpop.f32.mrf.mxu0
    %v63 = vadd.f32 %v36, %v62
    %64 = vmatmul.f32.gmra.mxu0 %v43
    %v65 = vpop.f32.mrf.mxu0
    %v66 = vadd.f32 %v36, %v65
    %67 = vdwg.mxu0
    %v68 = vmax.f32 %v63, 0.0
    %v69 = vmax.f32 %v66, 0.0
    %v71 = vperm.slane %v33, 0
    %v73 = vmul.f32 %v68, %v71
    %v74 = vmul.f32 %v69, %v71
    %vm75 = vcmask 130048
    %v76 = vsel %vm75, %v73, 0.0
    %77 = vadd.xlane.f32.xlu0 %v76
    %v78 = vpop.xlane.xlu0 %77
    %v79 = vsel %vm75, %v74, 0.0
    %80 = vadd.xlane.f32.xlu0 %v79
    %v81 = vpop.xlane.xlu0 %80
    %v83 = vperm.slane %v34, 0
    %84 = vset.pattern.permute.xlu0 0
    %85 = vperm.xlu0 %84, %v83
    %v86 = vpop.permute.xlu0 %85
    %v88 = vadd.f32 %v78, %v86
    %v89 = vadd.f32 %v81, %v86
    %v92 = vlaneseq
    %v93 = vand.u32 %v92, 127
    %v94 = vperm.slane %v88, %v93
    %v95 = vperm.slane %v89, %v93
    %vm96 = vcmask 1041409
    %v97 = vsel %vm96, %v95, %v94
    %vm99 = vcmask 58368
    %v100 = vsel %vm99, %v97, -inf
    %101 = vmax.xlane.f32.xlu0 %v100
    %v102 = vpop.xlane.xlu0 %101
    %v104 = vperm.slane %v102, 0
    %v105 = vperm.slane %v102, 1
    %v108 = vsub.f32 %v88, %v104
    %v109 = vsub.f32 %v89, %v105
    %v110 = vmul.f32 %v108, 1.442695
    %v111 = vpow.pop %v110
    %v112 = vmul.f32 %v109, 1.442695
    %v113 = vpow.pop %v112
    %116 = vset.pattern.permute.xlu0 0
    %117 = vperm.xlu0 %116, %v111
    %v118 = vpop.permute.xlu0 %117
    %119 = vset.pattern.permute.xlu0 0
    %120 = vperm.xlu0 %119, %v113
    %v121 = vpop.permute.xlu0 %120
    %v122 = vperm.slane %v118, %v93
    %v123 = vperm.slane %v121, %v93
    %v124 = vsel %vm96, %v123, %v122
    %v126 = vsel %vm99, %v124, 0.0
    %127 = vadd.xlane.f32.xlu0 %v126
    %v128 = vpop.xlane.xlu0 %127
    %v129 = vrcp.pop %v128
    %v131 = vperm.slane %v129, 0
    %v132 = vperm.slane %v129, 1
    %v135 = vmul.f32 %v111, %v131
    %v136 = vmul.f32 %v113, %v132
    %138 = vset.pattern.permute.xlu0 0
    %139 = vperm.xlu0 %138, %v135
    %v140 = vpop.permute.xlu0 %139
    %v141 = vperm.slane %v140, %v93
    %vm142 = vcmask 64512
    %v143 = vsel %vm142, %v141, 0
    %145 = vmatpush.msra.mxu0 0.0
    %146 = vmatpush.msra.mxu0 0.0
    %147 = vmatpush.msra.mxu0 0.0
    %148 = vmatpush.msra.mxu0 0.0
    %149 = vmatpush.msra.mxu0 0.0
    %150 = vmatpush.msra.mxu0 0.0
    %151 = vmatpush.msra.mxu0 0.0
    %152 = vmatpush.msra.mxu0 0.0
    %153 = vmatpush.msra.mxu0 0.0
    %154 = vmatpush.msra.mxu0 0.0
    %155 = vmatpush.msra.mxu0 0.0
    %156 = vmatpush.msra.mxu0 0.0
    %157 = vmatpush.msra.mxu0 0.0
    %158 = vmatpush.msra.mxu0 0.0
    %159 = vmatpush.msra.mxu0 0.0
    %160 = vmatpush.msra.mxu0 %v26
    %161 = vmatmul.f32.gmra.mxu0 %v143
    %v162 = vpop.f32.mrf.mxu0
    %v163 = vadd.f32 0.0, %v162
    %164 = vdwg.mxu0
    %166 = vset.pattern.permute.xlu0 0
    %167 = vperm.xlu0 %166, %v136
    %v168 = vpop.permute.xlu0 %167
    %v169 = vperm.slane %v168, %v93
    %v170 = vsel %vm142, %v169, 0
    %172 = vmatpush.msra.mxu0 0.0
    %173 = vmatpush.msra.mxu0 0.0
    %174 = vmatpush.msra.mxu0 0.0
    %175 = vmatpush.msra.mxu0 0.0
    %176 = vmatpush.msra.mxu0 0.0
    %177 = vmatpush.msra.mxu0 0.0
    %178 = vmatpush.msra.mxu0 0.0
    %179 = vmatpush.msra.mxu0 0.0
    %180 = vmatpush.msra.mxu0 0.0
    %181 = vmatpush.msra.mxu0 0.0
    %182 = vmatpush.msra.mxu0 0.0
    %183 = vmatpush.msra.mxu0 0.0
    %184 = vmatpush.msra.mxu0 0.0
    %185 = vmatpush.msra.mxu0 0.0
    %186 = vmatpush.msra.mxu0 0.0
    %187 = vmatpush.msra.mxu0 %v27
    %188 = vmatmul.f32.gmra.mxu0 %v170
    %v189 = vpop.f32.mrf.mxu0
    %v190 = vadd.f32 0.0, %v189
    %191 = vdwg.mxu0
    %v194 = vrot.slane %v190, 7
    %v195 = vsel %vm96, %v194, %v163
    %vm197 = vcmask 254976
    %198 = vst.msk [vmem:[#allocation3] sm:$0x3] %vm197, %v195
    %v199 = vsel %vm96, %v169, %v141
    %201 = vst.msk [vmem:[#allocation5] sm:$0x3] %vm99, %v199
    // Predicated region
    $region22: #{tpu_custom_call.1} parent=1 // pred_check
      _
    $region23: #{tpu_custom_call.1} parent=1 // pred_check_branch
      %203 = sbr.rel (0) target = $region25
    $region24: #{tpu_custom_call.1} parent=1 // pred_region
      %205 = vsyncadd [#allocation4], 0
      %s207 = sshll.u32 [#allocation3], 4
      %s208 = int_to_ptr.vmem [resolvable:$true] %s207
      %s209 = sshll.u32 %s5, 4
      %s210 = int_to_ptr.hbm [resolvable:$true] %s209
      %212 = dma.vmem_to_hbm [thread:$0]  %s208, 32, %s210, [#allocation4]
    $region25: #{tpu_custom_call.1} parent=1 // pred_fallthru
      _
    // Predicated region
    $region26: #{tpu_custom_call.1} parent=1 // pred_check
      _
    $region27: #{tpu_custom_call.1} parent=1 // pred_check_branch
      %214 = sbr.rel (0) target = $region29
    $region28: #{tpu_custom_call.1} parent=1 // pred_region
      %216 = vsyncadd [#allocation6], 0
      %s218 = sshll.u32 [#allocation5], 4
      %s219 = int_to_ptr.vmem [resolvable:$true] %s218
      %s220 = sshll.u32 %s6, 4
      %s221 = int_to_ptr.hbm [resolvable:$true] %s220
      %223 = dma.vmem_to_hbm [thread:$0]  %s219, 32, %s221, [#allocation6]
    $region29: #{tpu_custom_call.1} parent=1 // pred_fallthru
      _
    // Predicated region
    $region30: #{tpu_custom_call.1} parent=1 // pred_check
      _
    $region31: #{tpu_custom_call.1} parent=1 // pred_check_branch
      %225 = sbr.rel (0) target = $region33
    $region32: #{tpu_custom_call.1} parent=1 // pred_region
      %227 = dma.done [#allocation4], 32
    $region33: #{tpu_custom_call.1} parent=1 // pred_fallthru
      _
    // Predicated region
    $region34: #{tpu_custom_call.1} parent=1 // pred_check
      _
    $region35: #{tpu_custom_call.1} parent=1 // pred_check_branch
      %229 = sbr.rel (0) target = $region37
    $region36: #{tpu_custom_call.1} parent=1 // pred_region
      %231 = dma.done [#allocation6], 32
    $region37: #{tpu_custom_call.1} parent=1 // pred_fallthru
      _
    %232 = vsyncpa [#allocation4], 1
    %233 = vsyncpa [#allocation6], 1

</llo_original>
